<compile_context>
chip_gen: v5e
topology: v5e:2x2
jax: 0.10.0
libtpu: 0.0.40
codegen_flags: <defaults>
</compile_context>

<pallas_src>
import jax
import jax.numpy as jnp
from jax.experimental import pallas as pl
from jax.experimental.pallas import tpu as pltpu

_SUB = 8      # sublanes per inner sub-block
_LANES = 128  # lanes


def poly_model_kernel(x_ref, w_ref, b_ref, out_ref):
    # x_ref:   (n1, rt, 128) VMEM f32, batch on (sublane, lane)
    # w_ref:   (l3,)         SMEM f32, Linear weight (ascending index)
    # b_ref:   (1,)          SMEM f32, Linear bias
    # out_ref: (rt, 128)     VMEM f32
    n1, rt, _ = x_ref.shape
    l2 = 2 * n1 - 1          # len(x * x)
    l3 = 3 * n1 - 2          # len(x * x * x) == Linear in_features

    # Hoist scalar->vreg splats out of the sub-block loop (one per weight + bias).
    wv = [jnp.full((_SUB, _LANES), w_ref[j], dtype=jnp.float32) for j in range(l3)]
    bv = jnp.full((_SUB, _LANES), b_ref[0], dtype=jnp.float32)

    @pl.loop(0, rt // _SUB)
    def _(rb):
        r0 = pl.multiple_of(rb * _SUB, _SUB)
        # n1 dense (8,128) rows of this batch sub-block.
        xi = [x_ref[i, pl.ds(r0, _SUB), :] for i in range(n1)]
        # Pre-doubled rows for the symmetric off-diagonal pair products.
        dbl = {k: xi[k] + xi[k] for k in range(1, n1)}

        acc = None
        for j in range(l2):
            # sq_j[b] = sum_{i+k=j} x_i[b] * x_k[b]  (coefficient j of x*x, symmetric form)
            lo = max(0, j - (n1 - 1))
            sq_j = None
            for i in range(lo, j // 2 + 1):
                k = j - i
                t = xi[i] * xi[i] if i == k else xi[i] * dbl[k]
                sq_j = t if sq_j is None else sq_j + t
            # v_j[b] = sum_m w[j+m] * x_m[b]   (Linear folded into the 2nd convolution)
            v_j = wv[j] * xi[0]
            for m in range(1, n1):
                v_j = v_j + wv[j + m] * xi[m]
            term = sq_j * v_j
            acc = term if acc is None else acc + term

        out_ref[pl.ds(r0, _SUB), :] = jnp.maximum(acc + bv, 0.0)


def _cdiv(a, m):
    return (a + m - 1) // m


def _round_up(a, m):
    return _cdiv(a, m) * m


def simple_poly_model(x, weight, bias, *, batch_tile=32768):
    """x: (B, d+1); weight: (1, 3*(d+1)-2) (PyTorch layout); bias: (1,)."""
    B, n1 = x.shape
    l3 = 3 * n1 - 2
    assert weight.shape == (1, l3) and bias.shape == (1,)

    # Batch rows of 128 lanes; everything padded so each tile is whole (8,128) blocks.
    b_rows = _round_up(_cdiv(B, _LANES), _SUB)
    rt = max(_SUB, min(_round_up(max(batch_tile // _LANES, _SUB), _SUB), b_rows))
    b_rows_pad = _round_up(b_rows, rt)
    b_pad = b_rows_pad * _LANES

    # Batch-on-(sublane,lane) layout: (n1, rows, 128); zero-pad the extra batch slots.
    x_t = jnp.pad(x.astype(jnp.float32).T, ((0, 0), (0, b_pad - B)))
    x_t = x_t.reshape(n1, b_rows_pad, _LANES)
    w_flat = weight.reshape(l3).astype(jnp.float32)
    b_flat = bias.astype(jnp.float32)

    out = pl.pallas_call(
        poly_model_kernel,
        out_shape=jax.ShapeDtypeStruct((b_rows_pad, _LANES), jnp.float32),
        grid=(b_rows_pad // rt,),
        in_specs=[
            pl.BlockSpec((n1, rt, _LANES), lambda i: (0, i, 0)),
            pl.BlockSpec(memory_space=pltpu.MemorySpace.SMEM),
            pl.BlockSpec(memory_space=pltpu.MemorySpace.SMEM),
        ],
        out_specs=pl.BlockSpec((rt, _LANES), lambda i: (i, 0)),
        compiler_params=pltpu.CompilerParams(
            dimension_semantics=("parallel",)),
    )(x_t, w_flat, b_flat)

    # Padded lanes hold relu(bias); slice them off before returning.
    return out.reshape(-1)[:B].reshape(B, 1)


def _reference(x, weight, bias):
    """Pure-JAX reference (vmapped full polynomial convolution)."""
    conv = jax.vmap(lambda a, b: jnp.convolve(a, b, mode="full"))
    sq = conv(x, x)
    cu = conv(sq, x)
    y = cu @ weight.T + bias
    return jnp.maximum(y, 0.0)


if __name__ == "__main__":
    input_degree = 5                # polynomial degree
    B = 8                           # batch
    N1 = input_degree + 1           # 6 coefficients per polynomial
    L3 = 3 * N1 - 2                 # 16 = lin1 in_features

    key = jax.random.PRNGKey(0)
    kx, kw, kb, kx2 = jax.random.split(key, 4)
    x = jax.random.normal(kx, (B, N1), dtype=jnp.float32)
    # deterministic Linear params (PyTorch-style uniform(-1/sqrt(fan_in), +))
    bound = 1.0 / jnp.sqrt(jnp.float32(L3))
    weight = jax.random.uniform(kw, (1, L3), jnp.float32, -bound, bound)
    bias = jax.random.uniform(kb, (1,), jnp.float32, -bound, bound)

    out = simple_poly_model(x, weight, bias)
    out = jax.block_until_ready(out)
    ref = _reference(x, weight, bias)
    assert out.shape == (B, 1)
    assert jnp.allclose(out, ref, atol=1e-4, rtol=1e-5), (out, ref)

    # Second check exercising multi-tile grid + multi-sub-block inner loop + padding.
    B2 = 2500
    x2 = jax.random.normal(kx2, (B2, N1), dtype=jnp.float32)
    out2 = jax.block_until_ready(simple_poly_model(x2, weight, bias, batch_tile=2048))
    ref2 = _reference(x2, weight, bias)
    assert out2.shape == (B2, 1)
    assert jnp.allclose(out2, ref2, atol=1e-4, rtol=1e-5)

    print("KERNEL_OK")
</pallas_src>

<mosaic_0001>
module attributes {stable_mosaic.version = 11 : i64} {
  func.func @poly_model_kernel(%arg0: i32, %arg1: memref<6x8x128xf32, #tpu.memory_space<vmem>>, %arg2: memref<16xf32, #tpu.memory_space<smem>>, %arg3: memref<1xf32, #tpu.memory_space<smem>>, %arg4: memref<8x128xf32, #tpu.memory_space<vmem>>) attributes {dimension_semantics = [#tpu.dimension_semantics<parallel>], iteration_bounds = array<i64: 1>, scalar_prefetch = 0 : i64, scratch_operands = 0 : i64, tpu.core_type = #tpu.core_type<tc>, window_params = [{transform_indices = @transform_0, window_bounds = array<i64: 6, 8, 128>}, {transform_indices = @transform_1, window_bounds = array<i64: 16>}, {transform_indices = @transform_2, window_bounds = array<i64: 1>}, {transform_indices = @transform_3, window_bounds = array<i64: 8, 128>}]} {
    %c0 = arith.constant 0 : index
    %0 = memref.load %arg2[%c0] : memref<16xf32, #tpu.memory_space<smem>>
    %1 = vector.broadcast %0 : f32 to vector<8x128xf32>
    %c1 = arith.constant 1 : index
    %2 = memref.load %arg2[%c1] : memref<16xf32, #tpu.memory_space<smem>>
    %3 = vector.broadcast %2 : f32 to vector<8x128xf32>
    %c2 = arith.constant 2 : index
    %4 = memref.load %arg2[%c2] : memref<16xf32, #tpu.memory_space<smem>>
    %5 = vector.broadcast %4 : f32 to vector<8x128xf32>
    %c3 = arith.constant 3 : index
    %6 = memref.load %arg2[%c3] : memref<16xf32, #tpu.memory_space<smem>>
    %7 = vector.broadcast %6 : f32 to vector<8x128xf32>
    %c4 = arith.constant 4 : index
    %8 = memref.load %arg2[%c4] : memref<16xf32, #tpu.memory_space<smem>>
    %9 = vector.broadcast %8 : f32 to vector<8x128xf32>
    %c5 = arith.constant 5 : index
    %10 = memref.load %arg2[%c5] : memref<16xf32, #tpu.memory_space<smem>>
    %11 = vector.broadcast %10 : f32 to vector<8x128xf32>
    %c6 = arith.constant 6 : index
    %12 = memref.load %arg2[%c6] : memref<16xf32, #tpu.memory_space<smem>>
    %13 = vector.broadcast %12 : f32 to vector<8x128xf32>
    %c7 = arith.constant 7 : index
    %14 = memref.load %arg2[%c7] : memref<16xf32, #tpu.memory_space<smem>>
    %15 = vector.broadcast %14 : f32 to vector<8x128xf32>
    %c8 = arith.constant 8 : index
    %16 = memref.load %arg2[%c8] : memref<16xf32, #tpu.memory_space<smem>>
    %17 = vector.broadcast %16 : f32 to vector<8x128xf32>
    %c9 = arith.constant 9 : index
    %18 = memref.load %arg2[%c9] : memref<16xf32, #tpu.memory_space<smem>>
    %19 = vector.broadcast %18 : f32 to vector<8x128xf32>
    %c10 = arith.constant 10 : index
    %20 = memref.load %arg2[%c10] : memref<16xf32, #tpu.memory_space<smem>>
    %21 = vector.broadcast %20 : f32 to vector<8x128xf32>
    %c11 = arith.constant 11 : index
    %22 = memref.load %arg2[%c11] : memref<16xf32, #tpu.memory_space<smem>>
    %23 = vector.broadcast %22 : f32 to vector<8x128xf32>
    %c12 = arith.constant 12 : index
    %24 = memref.load %arg2[%c12] : memref<16xf32, #tpu.memory_space<smem>>
    %25 = vector.broadcast %24 : f32 to vector<8x128xf32>
    %c13 = arith.constant 13 : index
    %26 = memref.load %arg2[%c13] : memref<16xf32, #tpu.memory_space<smem>>
    %27 = vector.broadcast %26 : f32 to vector<8x128xf32>
    %c14 = arith.constant 14 : index
    %28 = memref.load %arg2[%c14] : memref<16xf32, #tpu.memory_space<smem>>
    %29 = vector.broadcast %28 : f32 to vector<8x128xf32>
    %c15 = arith.constant 15 : index
    %30 = memref.load %arg2[%c15] : memref<16xf32, #tpu.memory_space<smem>>
    %31 = vector.broadcast %30 : f32 to vector<8x128xf32>
    %c0_0 = arith.constant 0 : index
    %32 = memref.load %arg3[%c0_0] : memref<1xf32, #tpu.memory_space<smem>>
    %33 = vector.broadcast %32 : f32 to vector<8x128xf32>
    %c0_i32 = arith.constant 0 : i32
    %c1_i32 = arith.constant 1 : i32
    %34 = arith.muli %c0_i32, %c1_i32 : i32
    %c0_i32_1 = arith.constant 0 : i32
    %35 = arith.addi %c0_i32_1, %34 : i32
    %c8_i32 = arith.constant 8 : i32
    %36 = arith.muli %35, %c8_i32 : i32
    %37 = tpu.assume_multiple %36, 8 : i32
    %c0_2 = arith.constant 0 : index
    %38 = arith.index_cast %37 : i32 to index
    %c0_3 = arith.constant 0 : index
    %39 = vector.load %arg1[%c0_2, %38, %c0_3] : memref<6x8x128xf32, #tpu.memory_space<vmem>>, vector<1x8x128xf32>
    %40 = vector.shape_cast %39 : vector<1x8x128xf32> to vector<8x128xf32>
    %c1_4 = arith.constant 1 : index
    %41 = arith.index_cast %37 : i32 to index
    %c0_5 = arith.constant 0 : index
    %42 = vector.load %arg1[%c1_4, %41, %c0_5] : memref<6x8x128xf32, #tpu.memory_space<vmem>>, vector<1x8x128xf32>
    %43 = vector.shape_cast %42 : vector<1x8x128xf32> to vector<8x128xf32>
    %c2_6 = arith.constant 2 : index
    %44 = arith.index_cast %37 : i32 to index
    %c0_7 = arith.constant 0 : index
    %45 = vector.load %arg1[%c2_6, %44, %c0_7] : memref<6x8x128xf32, #tpu.memory_space<vmem>>, vector<1x8x128xf32>
    %46 = vector.shape_cast %45 : vector<1x8x128xf32> to vector<8x128xf32>
    %c3_8 = arith.constant 3 : index
    %47 = arith.index_cast %37 : i32 to index
    %c0_9 = arith.constant 0 : index
    %48 = vector.load %arg1[%c3_8, %47, %c0_9] : memref<6x8x128xf32, #tpu.memory_space<vmem>>, vector<1x8x128xf32>
    %49 = vector.shape_cast %48 : vector<1x8x128xf32> to vector<8x128xf32>
    %c4_10 = arith.constant 4 : index
    %50 = arith.index_cast %37 : i32 to index
    %c0_11 = arith.constant 0 : index
    %51 = vector.load %arg1[%c4_10, %50, %c0_11] : memref<6x8x128xf32, #tpu.memory_space<vmem>>, vector<1x8x128xf32>
    %52 = vector.shape_cast %51 : vector<1x8x128xf32> to vector<8x128xf32>
    %c5_12 = arith.constant 5 : index
    %53 = arith.index_cast %37 : i32 to index
    %c0_13 = arith.constant 0 : index
    %54 = vector.load %arg1[%c5_12, %53, %c0_13] : memref<6x8x128xf32, #tpu.memory_space<vmem>>, vector<1x8x128xf32>
    %55 = vector.shape_cast %54 : vector<1x8x128xf32> to vector<8x128xf32>
    %56 = arith.addf %43, %43 : vector<8x128xf32>
    %57 = arith.addf %46, %46 : vector<8x128xf32>
    %58 = arith.addf %49, %49 : vector<8x128xf32>
    %59 = arith.addf %52, %52 : vector<8x128xf32>
    %60 = arith.addf %55, %55 : vector<8x128xf32>
    %61 = arith.mulf %40, %40 : vector<8x128xf32>
    %62 = arith.mulf %1, %40 : vector<8x128xf32>
    %63 = arith.mulf %3, %43 : vector<8x128xf32>
    %64 = arith.addf %62, %63 : vector<8x128xf32>
    %65 = arith.mulf %5, %46 : vector<8x128xf32>
    %66 = arith.addf %64, %65 : vector<8x128xf32>
    %67 = arith.mulf %7, %49 : vector<8x128xf32>
    %68 = arith.addf %66, %67 : vector<8x128xf32>
    %69 = arith.mulf %9, %52 : vector<8x128xf32>
    %70 = arith.addf %68, %69 : vector<8x128xf32>
    %71 = arith.mulf %11, %55 : vector<8x128xf32>
    %72 = arith.addf %70, %71 : vector<8x128xf32>
    %73 = arith.mulf %61, %72 : vector<8x128xf32>
    %74 = arith.mulf %40, %56 : vector<8x128xf32>
    %75 = arith.mulf %3, %40 : vector<8x128xf32>
    %76 = arith.mulf %5, %43 : vector<8x128xf32>
    %77 = arith.addf %75, %76 : vector<8x128xf32>
    %78 = arith.mulf %7, %46 : vector<8x128xf32>
    %79 = arith.addf %77, %78 : vector<8x128xf32>
    %80 = arith.mulf %9, %49 : vector<8x128xf32>
    %81 = arith.addf %79, %80 : vector<8x128xf32>
    %82 = arith.mulf %11, %52 : vector<8x128xf32>
    %83 = arith.addf %81, %82 : vector<8x128xf32>
    %84 = arith.mulf %13, %55 : vector<8x128xf32>
    %85 = arith.addf %83, %84 : vector<8x128xf32>
    %86 = arith.mulf %74, %85 : vector<8x128xf32>
    %87 = arith.addf %73, %86 : vector<8x128xf32>
    %88 = arith.mulf %40, %57 : vector<8x128xf32>
    %89 = arith.mulf %43, %43 : vector<8x128xf32>
    %90 = arith.addf %88, %89 : vector<8x128xf32>
    %91 = arith.mulf %5, %40 : vector<8x128xf32>
    %92 = arith.mulf %7, %43 : vector<8x128xf32>
    %93 = arith.addf %91, %92 : vector<8x128xf32>
    %94 = arith.mulf %9, %46 : vector<8x128xf32>
    %95 = arith.addf %93, %94 : vector<8x128xf32>
    %96 = arith.mulf %11, %49 : vector<8x128xf32>
    %97 = arith.addf %95, %96 : vector<8x128xf32>
    %98 = arith.mulf %13, %52 : vector<8x128xf32>
    %99 = arith.addf %97, %98 : vector<8x128xf32>
    %100 = arith.mulf %15, %55 : vector<8x128xf32>
    %101 = arith.addf %99, %100 : vector<8x128xf32>
    %102 = arith.mulf %90, %101 : vector<8x128xf32>
    %103 = arith.addf %87, %102 : vector<8x128xf32>
    %104 = arith.mulf %40, %58 : vector<8x128xf32>
    %105 = arith.mulf %43, %57 : vector<8x128xf32>
    %106 = arith.addf %104, %105 : vector<8x128xf32>
    %107 = arith.mulf %7, %40 : vector<8x128xf32>
    %108 = arith.mulf %9, %43 : vector<8x128xf32>
    %109 = arith.addf %107, %108 : vector<8x128xf32>
    %110 = arith.mulf %11, %46 : vector<8x128xf32>
    %111 = arith.addf %109, %110 : vector<8x128xf32>
    %112 = arith.mulf %13, %49 : vector<8x128xf32>
    %113 = arith.addf %111, %112 : vector<8x128xf32>
    %114 = arith.mulf %15, %52 : vector<8x128xf32>
    %115 = arith.addf %113, %114 : vector<8x128xf32>
    %116 = arith.mulf %17, %55 : vector<8x128xf32>
    %117 = arith.addf %115, %116 : vector<8x128xf32>
    %118 = arith.mulf %106, %117 : vector<8x128xf32>
    %119 = arith.addf %103, %118 : vector<8x128xf32>
    %120 = arith.mulf %40, %59 : vector<8x128xf32>
    %121 = arith.mulf %43, %58 : vector<8x128xf32>
    %122 = arith.addf %120, %121 : vector<8x128xf32>
    %123 = arith.mulf %46, %46 : vector<8x128xf32>
    %124 = arith.addf %122, %123 : vector<8x128xf32>
    %125 = arith.mulf %9, %40 : vector<8x128xf32>
    %126 = arith.mulf %11, %43 : vector<8x128xf32>
    %127 = arith.addf %125, %126 : vector<8x128xf32>
    %128 = arith.mulf %13, %46 : vector<8x128xf32>
    %129 = arith.addf %127, %128 : vector<8x128xf32>
    %130 = arith.mulf %15, %49 : vector<8x128xf32>
    %131 = arith.addf %129, %130 : vector<8x128xf32>
    %132 = arith.mulf %17, %52 : vector<8x128xf32>
    %133 = arith.addf %131, %132 : vector<8x128xf32>
    %134 = arith.mulf %19, %55 : vector<8x128xf32>
    %135 = arith.addf %133, %134 : vector<8x128xf32>
    %136 = arith.mulf %124, %135 : vector<8x128xf32>
    %137 = arith.addf %119, %136 : vector<8x128xf32>
    %138 = arith.mulf %40, %60 : vector<8x128xf32>
    %139 = arith.mulf %43, %59 : vector<8x128xf32>
    %140 = arith.addf %138, %139 : vector<8x128xf32>
    %141 = arith.mulf %46, %58 : vector<8x128xf32>
    %142 = arith.addf %140, %141 : vector<8x128xf32>
    %143 = arith.mulf %11, %40 : vector<8x128xf32>
    %144 = arith.mulf %13, %43 : vector<8x128xf32>
    %145 = arith.addf %143, %144 : vector<8x128xf32>
    %146 = arith.mulf %15, %46 : vector<8x128xf32>
    %147 = arith.addf %145, %146 : vector<8x128xf32>
    %148 = arith.mulf %17, %49 : vector<8x128xf32>
    %149 = arith.addf %147, %148 : vector<8x128xf32>
    %150 = arith.mulf %19, %52 : vector<8x128xf32>
    %151 = arith.addf %149, %150 : vector<8x128xf32>
    %152 = arith.mulf %21, %55 : vector<8x128xf32>
    %153 = arith.addf %151, %152 : vector<8x128xf32>
    %154 = arith.mulf %142, %153 : vector<8x128xf32>
    %155 = arith.addf %137, %154 : vector<8x128xf32>
    %156 = arith.mulf %43, %60 : vector<8x128xf32>
    %157 = arith.mulf %46, %59 : vector<8x128xf32>
    %158 = arith.addf %156, %157 : vector<8x128xf32>
    %159 = arith.mulf %49, %49 : vector<8x128xf32>
    %160 = arith.addf %158, %159 : vector<8x128xf32>
    %161 = arith.mulf %13, %40 : vector<8x128xf32>
    %162 = arith.mulf %15, %43 : vector<8x128xf32>
    %163 = arith.addf %161, %162 : vector<8x128xf32>
    %164 = arith.mulf %17, %46 : vector<8x128xf32>
    %165 = arith.addf %163, %164 : vector<8x128xf32>
    %166 = arith.mulf %19, %49 : vector<8x128xf32>
    %167 = arith.addf %165, %166 : vector<8x128xf32>
    %168 = arith.mulf %21, %52 : vector<8x128xf32>
    %169 = arith.addf %167, %168 : vector<8x128xf32>
    %170 = arith.mulf %23, %55 : vector<8x128xf32>
    %171 = arith.addf %169, %170 : vector<8x128xf32>
    %172 = arith.mulf %160, %171 : vector<8x128xf32>
    %173 = arith.addf %155, %172 : vector<8x128xf32>
    %174 = arith.mulf %46, %60 : vector<8x128xf32>
    %175 = arith.mulf %49, %59 : vector<8x128xf32>
    %176 = arith.addf %174, %175 : vector<8x128xf32>
    %177 = arith.mulf %15, %40 : vector<8x128xf32>
    %178 = arith.mulf %17, %43 : vector<8x128xf32>
    %179 = arith.addf %177, %178 : vector<8x128xf32>
    %180 = arith.mulf %19, %46 : vector<8x128xf32>
    %181 = arith.addf %179, %180 : vector<8x128xf32>
    %182 = arith.mulf %21, %49 : vector<8x128xf32>
    %183 = arith.addf %181, %182 : vector<8x128xf32>
    %184 = arith.mulf %23, %52 : vector<8x128xf32>
    %185 = arith.addf %183, %184 : vector<8x128xf32>
    %186 = arith.mulf %25, %55 : vector<8x128xf32>
    %187 = arith.addf %185, %186 : vector<8x128xf32>
    %188 = arith.mulf %176, %187 : vector<8x128xf32>
    %189 = arith.addf %173, %188 : vector<8x128xf32>
    %190 = arith.mulf %49, %60 : vector<8x128xf32>
    %191 = arith.mulf %52, %52 : vector<8x128xf32>
    %192 = arith.addf %190, %191 : vector<8x128xf32>
    %193 = arith.mulf %17, %40 : vector<8x128xf32>
    %194 = arith.mulf %19, %43 : vector<8x128xf32>
    %195 = arith.addf %193, %194 : vector<8x128xf32>
    %196 = arith.mulf %21, %46 : vector<8x128xf32>
    %197 = arith.addf %195, %196 : vector<8x128xf32>
    %198 = arith.mulf %23, %49 : vector<8x128xf32>
    %199 = arith.addf %197, %198 : vector<8x128xf32>
    %200 = arith.mulf %25, %52 : vector<8x128xf32>
    %201 = arith.addf %199, %200 : vector<8x128xf32>
    %202 = arith.mulf %27, %55 : vector<8x128xf32>
    %203 = arith.addf %201, %202 : vector<8x128xf32>
    %204 = arith.mulf %192, %203 : vector<8x128xf32>
    %205 = arith.addf %189, %204 : vector<8x128xf32>
    %206 = arith.mulf %52, %60 : vector<8x128xf32>
    %207 = arith.mulf %19, %40 : vector<8x128xf32>
    %208 = arith.mulf %21, %43 : vector<8x128xf32>
    %209 = arith.addf %207, %208 : vector<8x128xf32>
    %210 = arith.mulf %23, %46 : vector<8x128xf32>
    %211 = arith.addf %209, %210 : vector<8x128xf32>
    %212 = arith.mulf %25, %49 : vector<8x128xf32>
    %213 = arith.addf %211, %212 : vector<8x128xf32>
    %214 = arith.mulf %27, %52 : vector<8x128xf32>
    %215 = arith.addf %213, %214 : vector<8x128xf32>
    %216 = arith.mulf %29, %55 : vector<8x128xf32>
    %217 = arith.addf %215, %216 : vector<8x128xf32>
    %218 = arith.mulf %206, %217 : vector<8x128xf32>
    %219 = arith.addf %205, %218 : vector<8x128xf32>
    %220 = arith.mulf %55, %55 : vector<8x128xf32>
    %221 = arith.mulf %21, %40 : vector<8x128xf32>
    %222 = arith.mulf %23, %43 : vector<8x128xf32>
    %223 = arith.addf %221, %222 : vector<8x128xf32>
    %224 = arith.mulf %25, %46 : vector<8x128xf32>
    %225 = arith.addf %223, %224 : vector<8x128xf32>
    %226 = arith.mulf %27, %49 : vector<8x128xf32>
    %227 = arith.addf %225, %226 : vector<8x128xf32>
    %228 = arith.mulf %29, %52 : vector<8x128xf32>
    %229 = arith.addf %227, %228 : vector<8x128xf32>
    %230 = arith.mulf %31, %55 : vector<8x128xf32>
    %231 = arith.addf %229, %230 : vector<8x128xf32>
    %232 = arith.mulf %220, %231 : vector<8x128xf32>
    %233 = arith.addf %219, %232 : vector<8x128xf32>
    %234 = arith.addf %233, %33 : vector<8x128xf32>
    %cst = arith.constant 0.000000e+00 : f32
    %235 = vector.broadcast %cst : f32 to vector<8x128xf32>
    %236 = arith.maximumf %234, %235 : vector<8x128xf32>
    %237 = arith.index_cast %37 : i32 to index
    %c0_14 = arith.constant 0 : index
    %238 = vector.load %arg4[%237, %c0_14] : memref<8x128xf32, #tpu.memory_space<vmem>>, vector<8x128xf32>
    tpu.vector_store %arg4[%237, %c0_14], %236 {strides = array<i32>} : memref<8x128xf32, #tpu.memory_space<vmem>>, vector<8x128xf32>,
    %c1_i32_15 = arith.constant 1 : i32
    return
  }
  func.func @transform_0(%arg0: i32) -> (i32, i32, i32) {
    %c0_i32 = arith.constant 0 : i32
    %c0_i32_0 = arith.constant 0 : i32
    %c0_i32_1 = arith.constant 0 : i32
    return %c0_i32, %arg0, %c0_i32_0 : i32, i32, i32
  }
  func.func @transform_1(%arg0: i32) -> i32 {
    %c0_i32 = arith.constant 0 : i32
    %c0_i32_0 = arith.constant 0 : i32
    return %c0_i32 : i32
  }
  func.func @transform_2(%arg0: i32) -> i32 {
    %c0_i32 = arith.constant 0 : i32
    %c0_i32_0 = arith.constant 0 : i32
    return %c0_i32 : i32
  }
  func.func @transform_3(%arg0: i32) -> (i32, i32) {
    %c0_i32 = arith.constant 0 : i32
    %c0_i32_0 = arith.constant 0 : i32
    return %arg0, %c0_i32 : i32, i32
  }
}

</mosaic_0001>

<llo_original>
// kernel: tpu_custom_call.1
$region0: #{tpu_custom_call.1}
  #allocation0 [shape = 'u32[]', space=smem, size = 0x4, offset = 0x4, fixed_abs, tag = 'smem constant byte address 0x4 - core index']
  #allocation1 [shape = 'u32[72,128]{1,0:T(1,128)}', space=vmem, size = 0x9000, scoped, tag = 'internal scratch']
  #allocation2 [shape = 'f32[1]{0:T(128)S(6)}', space=smem, size = 0x200, scoped, tag = 'scoped memory for tpu_custom_call.1']
  %s0 = inlined_call_operand.hbm [shape: f32[6,8,128], index: 0, kind: input, shape index: {}]
  %s1 = inlined_call_operand.vmem [shape: f32[16], index: 1, kind: input, shape index: {}]
  %s2 = inlined_call_operand.<no memory space> [shape: f32[1], index: 2, kind: input, shape index: {}]
  %s3 = inlined_call_operand.hbm [shape: f32[8,128], index: 3, kind: output, shape index: {}]
  %s4 = sld [smem:[#allocation0]]
  $region30: #{tpu_custom_call.1} parent=0
    _
  %s6 = ssub.s32 1, %s4
  %s7 = scalar_select 0, %s6, %s4
  %8 = sst [smem:[#allocation2]] %s2
  $region1: #{tpu_custom_call.1} parent=0
    #allocation3 [shape = 'u8[24576]{0}', space=vmem, size = 0x6000, scoped, tag = 'input window, operand 0, single buffered']
    #allocation4 [shape = 's32[1]{0}', space=sflag, size = 0x4, scoped, tag = 'scoped memory for tpu_custom_call.1']
    #allocation5 [shape = 's32[1]{0}', space=sflag, size = 0x4, scoped, tag = 'scoped memory for tpu_custom_call.1']
    #allocation6 [shape = 's32[1]{0}', space=sflag, size = 0x4, scoped, tag = 'scoped memory for tpu_custom_call.1']
    #allocation7 [shape = 'u8[512]{0}', space=smem, size = 0x200, scoped, tag = 'input window, operand 1, single buffered']
    #allocation8 [shape = 'u8[4096]{0}', space=vmem, size = 0x1000, scoped, tag = 'output window, operand 0, single buffered']
    %9 = vsyncpa [#allocation4], 0
    %10 = vsyncpa [#allocation6], 0
    %11 = vsyncpa [#allocation5], 0
    // Predicated region
    $region2: #{tpu_custom_call.1} parent=1 // pred_check
      _
    $region3: #{tpu_custom_call.1} parent=1 // pred_check_branch
      %13 = sbr.rel (0) target = $region5
    $region4: #{tpu_custom_call.1} parent=1 // pred_region
      %15 = vsyncadd [#allocation4], 0
      %s16 = sshll.u32 %s0, 4
      %s17 = int_to_ptr.hbm [resolvable:$true] %s16
      %s18 = sshll.u32 [#allocation3], 4
      %s19 = int_to_ptr.vmem [resolvable:$true] %s18
      %24 = dma.hbm_to_vmem [thread:$0]  %s17, 768, %s19, [#allocation4], 128, 128, 8
    $region5: #{tpu_custom_call.1} parent=1 // pred_fallthru
      _
    // Predicated region
    $region6: #{tpu_custom_call.1} parent=1 // pred_check
      _
    $region7: #{tpu_custom_call.1} parent=1 // pred_check_branch
      %26 = sbr.rel (0) target = $region9
    $region8: #{tpu_custom_call.1} parent=1 // pred_region
      %28 = vsyncadd [#allocation6], 0
      %s30 = sshll.u32 %s1, 4
      %s31 = int_to_ptr.vmem [resolvable:$true] %s30
      %33 = dma.vmem_to_smem %s31, 16, [#allocation7], [#allocation6]
    $region9: #{tpu_custom_call.1} parent=1 // pred_fallthru
      _
    // Predicated region
    $region10: #{tpu_custom_call.1} parent=1 // pred_check
      _
    $region11: #{tpu_custom_call.1} parent=1 // pred_check_branch
      %35 = sbr.rel (0) target = $region13
    $region12: #{tpu_custom_call.1} parent=1 // pred_region
      _
    $region13: #{tpu_custom_call.1} parent=1 // pred_fallthru
      _
    // Predicated region
    $region14: #{tpu_custom_call.1} parent=1 // pred_check
      _
    $region15: #{tpu_custom_call.1} parent=1 // pred_check_branch
      %37 = sbr.rel (0) target = $region17
    $region16: #{tpu_custom_call.1} parent=1 // pred_region
      %39 = dma.done [#allocation4], 768
    $region17: #{tpu_custom_call.1} parent=1 // pred_fallthru
      _
    // Predicated region
    $region18: #{tpu_custom_call.1} parent=1 // pred_check
      _
    $region19: #{tpu_custom_call.1} parent=1 // pred_check_branch
      %41 = sbr.rel (0) target = $region21
    $region20: #{tpu_custom_call.1} parent=1 // pred_region
      %43 = dma.done [#allocation6], 16
    $region21: #{tpu_custom_call.1} parent=1 // pred_fallthru
      _
    %44 = sfence
    %s45 = sld [smem:[#allocation7]]
    %v46 = vstv %s45
    %s47 = sld [smem:[#allocation7 + $0x1]]
    %v48 = vstv %s47
    %s49 = sld [smem:[#allocation7 + $0x2]]
    %v50 = vstv %s49
    %s51 = sld [smem:[#allocation7 + $0x3]]
    %v52 = vstv %s51
    %s53 = sld [smem:[#allocation7 + $0x4]]
    %v54 = vstv %s53
    %s55 = sld [smem:[#allocation7 + $0x5]]
    %v56 = vstv %s55
    %s57 = sld [smem:[#allocation7 + $0x6]]
    %v58 = vstv %s57
    %s59 = sld [smem:[#allocation7 + $0x7]]
    %v60 = vstv %s59
    %s61 = sld [smem:[#allocation7 + $0x8]]
    %v62 = vstv %s61
    %s63 = sld [smem:[#allocation7 + $0x9]]
    %v64 = vstv %s63
    %s65 = sld [smem:[#allocation7 + $0xa]]
    %v66 = vstv %s65
    %s67 = sld [smem:[#allocation7 + $0xb]]
    %v68 = vstv %s67
    %s69 = sld [smem:[#allocation7 + $0xc]]
    %v70 = vstv %s69
    %s71 = sld [smem:[#allocation7 + $0xd]]
    %v72 = vstv %s71
    %s73 = sld [smem:[#allocation7 + $0xe]]
    %v74 = vstv %s73
    %s75 = sld [smem:[#allocation7 + $0xf]]
    %v76 = vstv %s75
    %s77 = sld [smem:[#allocation2]]
    %v78 = vstv %s77
    %v79 = vld [vmem:[#allocation3] sm:$0xff]
    %s80 = sadd.s32 0, 8
    %s81 = scalar_lea.vmem [#allocation3], %s80
    %v82 = vld [vmem:[%s81] sm:$0xff]
    %s83 = sadd.s32 0, 16
    %s84 = scalar_lea.vmem [#allocation3], %s83
    %v85 = vld [vmem:[%s84] sm:$0xff]
    %s86 = sadd.s32 0, 24
    %s87 = scalar_lea.vmem [#allocation3], %s86
    %v88 = vld [vmem:[%s87] sm:$0xff]
    %s89 = sadd.s32 0, 32
    %s90 = scalar_lea.vmem [#allocation3], %s89
    %v91 = vld [vmem:[%s90] sm:$0xff]
    %s92 = sadd.s32 0, 40
    %s93 = scalar_lea.vmem [#allocation3], %s92
    %v94 = vld [vmem:[%s93] sm:$0xff]
    %v95 = vadd.f32 %v82, %v82
    %v96 = vadd.f32 %v85, %v85
    %v97 = vadd.f32 %v88, %v88
    %v98 = vadd.f32 %v91, %v91
    %v99 = vadd.f32 %v94, %v94
    %v100 = vmul.f32 %v79, %v79
    %v101 = vmul.f32 %v46, %v79
    %v102 = vmul.f32 %v48, %v82
    %v103 = vadd.f32 %v101, %v102
    %v104 = vmul.f32 %v50, %v85
    %v105 = vadd.f32 %v103, %v104
    %v106 = vmul.f32 %v52, %v88
    %v107 = vadd.f32 %v105, %v106
    %v108 = vmul.f32 %v54, %v91
    %v109 = vadd.f32 %v107, %v108
    %v110 = vmul.f32 %v56, %v94
    %v111 = vadd.f32 %v109, %v110
    %v112 = vmul.f32 %v100, %v111
    %v113 = vmul.f32 %v79, %v95
    %v114 = vmul.f32 %v48, %v79
    %v115 = vmul.f32 %v50, %v82
    %v116 = vadd.f32 %v114, %v115
    %v117 = vmul.f32 %v52, %v85
    %v118 = vadd.f32 %v116, %v117
    %v119 = vmul.f32 %v54, %v88
    %v120 = vadd.f32 %v118, %v119
    %v121 = vmul.f32 %v56, %v91
    %v122 = vadd.f32 %v120, %v121
    %v123 = vmul.f32 %v58, %v94
    %v124 = vadd.f32 %v122, %v123
    %v125 = vmul.f32 %v113, %v124
    %v126 = vadd.f32 %v112, %v125
    %v127 = vmul.f32 %v79, %v96
    %v128 = vmul.f32 %v82, %v82
    %v129 = vadd.f32 %v127, %v128
    %v130 = vmul.f32 %v50, %v79
    %v131 = vmul.f32 %v52, %v82
    %v132 = vadd.f32 %v130, %v131
    %v133 = vmul.f32 %v54, %v85
    %v134 = vadd.f32 %v132, %v133
    %v135 = vmul.f32 %v56, %v88
    %v136 = vadd.f32 %v134, %v135
    %v137 = vmul.f32 %v58, %v91
    %v138 = vadd.f32 %v136, %v137
    %v139 = vmul.f32 %v60, %v94
    %v140 = vadd.f32 %v138, %v139
    %v141 = vmul.f32 %v129, %v140
    %v142 = vadd.f32 %v126, %v141
    %v143 = vmul.f32 %v79, %v97
    %v144 = vmul.f32 %v82, %v96
    %v145 = vadd.f32 %v143, %v144
    %v146 = vmul.f32 %v52, %v79
    %v147 = vmul.f32 %v54, %v82
    %v148 = vadd.f32 %v146, %v147
    %v149 = vmul.f32 %v56, %v85
    %v150 = vadd.f32 %v148, %v149
    %v151 = vmul.f32 %v58, %v88
    %v152 = vadd.f32 %v150, %v151
    %v153 = vmul.f32 %v60, %v91
    %v154 = vadd.f32 %v152, %v153
    %v155 = vmul.f32 %v62, %v94
    %v156 = vadd.f32 %v154, %v155
    %v157 = vmul.f32 %v145, %v156
    %v158 = vadd.f32 %v142, %v157
    %v159 = vmul.f32 %v79, %v98
    %v160 = vmul.f32 %v82, %v97
    %v161 = vadd.f32 %v159, %v160
    %v162 = vmul.f32 %v85, %v85
    %v163 = vadd.f32 %v161, %v162
    %v164 = vmul.f32 %v54, %v79
    %v165 = vmul.f32 %v56, %v82
    %v166 = vadd.f32 %v164, %v165
    %v167 = vmul.f32 %v58, %v85
    %v168 = vadd.f32 %v166, %v167
    %v169 = vmul.f32 %v60, %v88
    %v170 = vadd.f32 %v168, %v169
    %v171 = vmul.f32 %v62, %v91
    %v172 = vadd.f32 %v170, %v171
    %v173 = vmul.f32 %v64, %v94
    %v174 = vadd.f32 %v172, %v173
    %v175 = vmul.f32 %v163, %v174
    %v176 = vadd.f32 %v158, %v175
    %v177 = vmul.f32 %v79, %v99
    %v178 = vmul.f32 %v82, %v98
    %v179 = vadd.f32 %v177, %v178
    %v180 = vmul.f32 %v85, %v97
    %v181 = vadd.f32 %v179, %v180
    %v182 = vmul.f32 %v56, %v79
    %v183 = vmul.f32 %v58, %v82
    %v184 = vadd.f32 %v182, %v183
    %v185 = vmul.f32 %v60, %v85
    %v186 = vadd.f32 %v184, %v185
    %v187 = vmul.f32 %v62, %v88
    %v188 = vadd.f32 %v186, %v187
    %v189 = vmul.f32 %v64, %v91
    %v190 = vadd.f32 %v188, %v189
    %v191 = vmul.f32 %v66, %v94
    %v192 = vadd.f32 %v190, %v191
    %v193 = vmul.f32 %v181, %v192
    %v194 = vadd.f32 %v176, %v193
    %v195 = vmul.f32 %v82, %v99
    %v196 = vmul.f32 %v85, %v98
    %v197 = vadd.f32 %v195, %v196
    %v198 = vmul.f32 %v88, %v88
    %v199 = vadd.f32 %v197, %v198
    %v200 = vmul.f32 %v58, %v79
    %v201 = vmul.f32 %v60, %v82
    %v202 = vadd.f32 %v200, %v201
    %v203 = vmul.f32 %v62, %v85
    %v204 = vadd.f32 %v202, %v203
    %v205 = vmul.f32 %v64, %v88
    %v206 = vadd.f32 %v204, %v205
    %v207 = vmul.f32 %v66, %v91
    %v208 = vadd.f32 %v206, %v207
    %v209 = vmul.f32 %v68, %v94
    %v210 = vadd.f32 %v208, %v209
    %v211 = vmul.f32 %v199, %v210
    %v212 = vadd.f32 %v194, %v211
    %v213 = vmul.f32 %v85, %v99
    %v214 = vmul.f32 %v88, %v98
    %v215 = vadd.f32 %v213, %v214
    %v216 = vmul.f32 %v60, %v79
    %v217 = vmul.f32 %v62, %v82
    %v218 = vadd.f32 %v216, %v217
    %v219 = vmul.f32 %v64, %v85
    %v220 = vadd.f32 %v218, %v219
    %v221 = vmul.f32 %v66, %v88
    %v222 = vadd.f32 %v220, %v221
    %v223 = vmul.f32 %v68, %v91
    %v224 = vadd.f32 %v222, %v223
    %v225 = vmul.f32 %v70, %v94
    %v226 = vadd.f32 %v224, %v225
    %v227 = vmul.f32 %v215, %v226
    %v228 = vadd.f32 %v212, %v227
    %v229 = vmul.f32 %v88, %v99
    %v230 = vmul.f32 %v91, %v91
    %v231 = vadd.f32 %v229, %v230
    %v232 = vmul.f32 %v62, %v79
    %v233 = vmul.f32 %v64, %v82
    %v234 = vadd.f32 %v232, %v233
    %v235 = vmul.f32 %v66, %v85
    %v236 = vadd.f32 %v234, %v235
    %v237 = vmul.f32 %v68, %v88
    %v238 = vadd.f32 %v236, %v237
    %v239 = vmul.f32 %v70, %v91
    %v240 = vadd.f32 %v238, %v239
    %v241 = vmul.f32 %v72, %v94
    %v242 = vadd.f32 %v240, %v241
    %v243 = vmul.f32 %v231, %v242
    %v244 = vadd.f32 %v228, %v243
    %v245 = vmul.f32 %v91, %v99
    %v246 = vmul.f32 %v64, %v79
    %v247 = vmul.f32 %v66, %v82
    %v248 = vadd.f32 %v246, %v247
    %v249 = vmul.f32 %v68, %v85
    %v250 = vadd.f32 %v248, %v249
    %v251 = vmul.f32 %v70, %v88
    %v252 = vadd.f32 %v250, %v251
    %v253 = vmul.f32 %v72, %v91
    %v254 = vadd.f32 %v252, %v253
    %v255 = vmul.f32 %v74, %v94
    %v256 = vadd.f32 %v254, %v255
    %v257 = vmul.f32 %v245, %v256
    %v258 = vadd.f32 %v244, %v257
    %v259 = vmul.f32 %v94, %v94
    %v260 = vmul.f32 %v66, %v79
    %v261 = vmul.f32 %v68, %v82
    %v262 = vadd.f32 %v260, %v261
    %v263 = vmul.f32 %v70, %v85
    %v264 = vadd.f32 %v262, %v263
    %v265 = vmul.f32 %v72, %v88
    %v266 = vadd.f32 %v264, %v265
    %v267 = vmul.f32 %v74, %v91
    %v268 = vadd.f32 %v266, %v267
    %v269 = vmul.f32 %v76, %v94
    %v270 = vadd.f32 %v268, %v269
    %v271 = vmul.f32 %v259, %v270
    %v272 = vadd.f32 %v258, %v271
    %v273 = vadd.f32 %v272, %v78
    %v274 = vmax.f32 %v273, 0.0
    %275 = vst [vmem:[#allocation8] sm:$0xff] %v274
    // Predicated region
    $region22: #{tpu_custom_call.1} parent=1 // pred_check
      _
    $region23: #{tpu_custom_call.1} parent=1 // pred_check_branch
      %277 = sbr.rel (0) target = $region25
    $region24: #{tpu_custom_call.1} parent=1 // pred_region
      %279 = vsyncadd [#allocation5], 0
      %s281 = sshll.u32 [#allocation8], 4
      %s282 = int_to_ptr.vmem [resolvable:$true] %s281
      %s283 = sshll.u32 %s3, 4
      %s284 = int_to_ptr.hbm [resolvable:$true] %s283
      %286 = dma.vmem_to_hbm [thread:$0]  %s282, 128, %s284, [#allocation5]
    $region25: #{tpu_custom_call.1} parent=1 // pred_fallthru
      _
    // Predicated region
    $region26: #{tpu_custom_call.1} parent=1 // pred_check
      _
    $region27: #{tpu_custom_call.1} parent=1 // pred_check_branch
      %288 = sbr.rel (0) target = $region29
    $region28: #{tpu_custom_call.1} parent=1 // pred_region
      %290 = dma.done [#allocation5], 128
    $region29: #{tpu_custom_call.1} parent=1 // pred_fallthru
      _
    %291 = vsyncpa [#allocation4], 1
    %292 = vsyncpa [#allocation5], 1
    %293 = vsyncpa [#allocation6], 1

</llo_original>
